<compile_context>
chip_gen: v7x
topology: tpu7x:2x2x1
jax: 0.10.0
libtpu: 0.0.40
codegen_flags: <defaults>
</compile_context>

<pallas_src>
import functools

import jax
import jax.numpy as jnp
from jax import lax
from jax.experimental import pallas as pl
from jax.experimental.pallas import tpu as pltpu


def _round_up(x, m):
    return ((x + m - 1) // m) * m


def _sublane_multiple(*dtypes):
    # 8 sublanes of 32-bit; sub-32-bit dtypes pack along sublanes.
    item = min(jnp.dtype(d).itemsize for d in dtypes)
    return max(8, 32 // max(item, 1))


@functools.lru_cache(maxsize=None)
def _vmem_capacity_bytes():
    """Physical VMEM per TensorCore; conservative 64 MiB (v7x) fallback."""
    try:
        info = pltpu.get_tpu_info()
    except Exception:
        return 64 << 20
    for attr in ("vmem_capacity_bytes", "vmem_size_bytes", "vmem_bytes"):
        val = getattr(info, attr, None)
        if val:
            try:
                return int(val)
            except (TypeError, ValueError):
                pass
    return 64 << 20


def _dot_nt(x_tile, w_tile, precision):
    # x_tile: [tm, tk], w_tile: [tn, tk] -> [tm, tn]; contract trailing dims.
    # The MXU consumes the transposed RHS natively — no transpose, no movement.
    return lax.dot_general(
        x_tile, w_tile, (((1,), (1,)), ((), ())),
        preferred_element_type=jnp.float32,
        precision=precision,
    )


def _kernel_single_k(x_ref, w_ref, o_ref, *, precision):
    # d_model fits in a single K tile: no accumulator at all.
    o_ref[...] = _dot_nt(x_ref[...], w_ref[...], precision).astype(o_ref.dtype)


def _kernel_acc_in_out(x_ref, w_ref, o_ref, *, precision):
    # f32 output: accumulate directly into the VMEM-resident output tile
    # (output BlockSpec is invariant along the K grid axis -> revisit pattern).
    @pl.when(pl.program_id(2) == 0)
    def _():
        o_ref[...] = jnp.zeros_like(o_ref)

    o_ref[...] += _dot_nt(x_ref[...], w_ref[...], precision)


def _kernel_scratch_acc(x_ref, w_ref, o_ref, acc_ref, *, precision):
    # Narrow output dtype: accumulate in f32 scratch, cast once at the end.
    @pl.when(pl.program_id(2) == 0)
    def _():
        acc_ref[...] = jnp.zeros_like(acc_ref)

    acc_ref[...] += _dot_nt(x_ref[...], w_ref[...], precision)

    @pl.when(pl.program_id(2) == pl.num_programs(2) - 1)
    def _():
        o_ref[...] = acc_ref[...].astype(o_ref.dtype)


@functools.partial(
    jax.jit,
    static_argnames=("out_dtype", "stream_dtype", "precision",
                     "tm_max", "tn_max", "tk_max"),
)
def unembed(resid_post_mlp, weight, *, out_dtype=None, stream_dtype=None,
            precision=None, tm_max=512, tn_max=None, tk_max=2048):
    """out[b, s, v] = sum_d resid_post_mlp[b, s, d] * weight[v, d]

    Production decode path: pass bf16 operands (or stream_dtype=jnp.bfloat16)
    — the kernel is weight-bandwidth bound and always accumulates in f32.
    """
    batch, seq, d_model = resid_post_mlp.shape
    d_vocab, d_model_w = weight.shape
    assert d_model == d_model_w, "d_model mismatch between activations and weight"

    M, K, N = batch * seq, d_model, d_vocab
    out_dtype = jnp.dtype(resid_post_mlp.dtype if out_dtype is None else out_dtype)

    # ---- streaming dtype: unify operands (optionally cast to bf16) ----------
    x = resid_post_mlp.reshape(M, K)
    w = weight                         # native [d_vocab, d_model]; never padded
    sdt = jnp.dtype(stream_dtype) if stream_dtype is not None \
        else jnp.promote_types(x.dtype, w.dtype)
    if x.dtype != sdt:
        x = x.astype(sdt)
    if w.dtype != sdt:
        w = w.astype(sdt)

    sub = _sublane_multiple(sdt, out_dtype)

    # ---- tile selection ------------------------------------------------------
    # tm: balanced M tiles (single tile for decode-sized M) so the dominant
    # vocab weight stream is read from HBM as few times as possible.
    if M <= tm_max:
        tm = _round_up(M, sub)
    else:
        tm = _round_up(pl.cdiv(M, pl.cdiv(M, tm_max)), sub)

    # tk: exact (divides K or equals K) so the contraction never sees OOB data.
    if K <= tk_max or K % 128 != 0:
        tk = K        # single K tile (block dim == full array dim is allowed)
    else:
        tk = 128
        for cand in range(_round_up(min(tk_max, K), 128), 127, -128):
            if K % cand == 0:
                tk = cand
                break

    # tn: lane-dense vocab tiles, generation-aware default.
    vmem_cap = _vmem_capacity_bytes()
    if vmem_cap >= (96 << 20):          # v5e / v6e: 128 MiB VMEM
        gen_tn, vmem_cap_limit = 4096, 100 << 20
    else:                               # v7x: 64 MiB VMEM per TensorCore
        gen_tn, vmem_cap_limit = 2048, 48 << 20
    tn = min(tn_max if tn_max is not None else gen_tn, _round_up(N, 128))
    tn = max(128, _round_up(tn, 128))
    # Keep at least two vocab tiles so both v7x TensorCores get parallel work.
    if pl.cdiv(N, tn) < 2 and N > 128:
        tn = max(128, _round_up(pl.cdiv(N, 2), 128))

    # ---- shrink tiles until the double-buffered footprint fits the budget ---
    x_item, w_item, out_item = sdt.itemsize, sdt.itemsize, out_dtype.itemsize

    def tile_bytes(tm_, tn_, tk_):
        k_steps_ = pl.cdiv(K, tk_)
        scratch = tm_ * tn_ * 4 if (k_steps_ > 1 and out_dtype != jnp.float32) else 0
        return (2 * (tm_ * tk_ * x_item + tn_ * tk_ * w_item)
                + 2 * tm_ * tn_ * out_item + scratch)

    budget = int(vmem_cap_limit * 0.85)
    while tile_bytes(tm, tn, tk) > budget:
        if tn > 512:
            tn = max(512, _round_up(tn // 2, 128))
        elif tk > 512 and tk % 256 == 0 and K % (tk // 2) == 0:
            tk //= 2
        elif tm > sub:
            tm = max(sub, _round_up(tm // 2, sub))
        else:
            break

    k_steps = pl.cdiv(K, tk)
    grid = (pl.cdiv(M, tm), pl.cdiv(N, tn), k_steps)

    # ---- pick kernel variant -------------------------------------------------
    if k_steps == 1:
        kernel_fn, scratch_shapes = _kernel_single_k, []
    elif out_dtype == jnp.float32:
        kernel_fn, scratch_shapes = _kernel_acc_in_out, []   # no scratch/copy
    else:
        kernel_fn, scratch_shapes = (_kernel_scratch_acc,
                                     [pltpu.VMEM((tm, tn), jnp.float32)])
    kernel = functools.partial(kernel_fn, precision=precision)

    vmem_limit = min(max(int(tile_bytes(tm, tn, tk) * 1.2) + (1 << 20), 32 << 20),
                     vmem_cap_limit)

    cost = pl.CostEstimate(
        flops=2 * M * N * K,
        transcendentals=0,
        bytes_accessed=int(M * K * x_item + N * K * w_item + M * N * out_item),
    )

    # NOTE: for prefill-sized M the x tile is re-fetched once per vocab tile
    # (cheap relative to the weight stream); the big-VMEM generations use
    # tn=4096 to halve that re-read count.
    out_flat = pl.pallas_call(
        kernel,
        out_shape=jax.ShapeDtypeStruct((M, N), out_dtype),
        grid_spec=pltpu.PrefetchScalarGridSpec(
            num_scalar_prefetch=0,
            grid=grid,
            in_specs=[
                pl.BlockSpec((tm, tk), lambda i, j, k: (i, k)),
                # weight in native [d_vocab, d_model] layout — no transpose/pad.
                pl.BlockSpec((tn, tk), lambda i, j, k: (j, k)),
            ],
            out_specs=pl.BlockSpec((tm, tn), lambda i, j, k: (i, j)),
            scratch_shapes=scratch_shapes,
        ),
        compiler_params=pltpu.CompilerParams(
            dimension_semantics=("parallel", "parallel", "arbitrary"),
            vmem_limit_bytes=vmem_limit,
        ),
        cost_estimate=cost,
    )(x, w)

    return out_flat.reshape(batch, seq, N)


if __name__ == "__main__":
    key = jax.random.PRNGKey(0)
    k_x, k_w, k_x2, k_w2, k_x3, k_w3 = jax.random.split(key, 6)

    # ---- primary small test (shapes implied by the module forward) ---------
    batch, seq, d_model, d_vocab = 2, 8, 32, 128
    resid_post_mlp = jax.random.normal(k_x, (batch, seq, d_model), dtype=jnp.float32)
    weight = jax.random.normal(k_w, (d_vocab, d_model), dtype=jnp.float32) * 0.02

    out = jax.block_until_ready(unembed(resid_post_mlp, weight))
    ref = jnp.einsum("bsd,vd->bsv", resid_post_mlp, weight,
                     preferred_element_type=jnp.float32)
    assert out.shape == (batch, seq, d_vocab)
    assert out.dtype == jnp.float32
    assert jnp.allclose(out, ref, atol=1e-4, rtol=1e-4)

    # ---- non-128 vocab (partial edge tiles, no padding), f32, single-K path -
    b2, s2, d2, v2 = 2, 128, 1024, 1000
    x2 = jax.random.normal(k_x2, (b2, s2, d2), dtype=jnp.float32)
    w2 = jax.random.normal(k_w2, (v2, d2), dtype=jnp.float32) * 0.02
    out2 = jax.block_until_ready(unembed(x2, w2))
    ref2 = jnp.einsum("bsd,vd->bsv", x2, w2, preferred_element_type=jnp.float32)
    assert out2.shape == (b2, s2, v2)
    assert jnp.allclose(out2, ref2, atol=1e-2, rtol=1e-2)

    # ---- bf16 streaming (production decode path), f32 logits ----------------
    x2b, w2b = x2.astype(jnp.bfloat16), w2.astype(jnp.bfloat16)
    out3 = jax.block_until_ready(unembed(x2b, w2b, out_dtype=jnp.float32))
    ref3 = jnp.einsum("bsd,vd->bsv", x2b, w2b, preferred_element_type=jnp.float32)
    assert out3.dtype == jnp.float32
    assert jnp.allclose(out3, ref3, atol=5e-2, rtol=5e-2)

    # ---- multi-K-tile paths (d_model > tk_max): f32 in-output accumulation
    # ---- and f32-scratch accumulation for a narrow (bf16) output ------------
    b4, s4, d4, v4 = 2, 32, 4096, 640
    x4 = jax.random.normal(k_x3, (b4, s4, d4), dtype=jnp.bfloat16)
    w4 = (jax.random.normal(k_w3, (v4, d4), dtype=jnp.float32) * 0.02
          ).astype(jnp.bfloat16)
    ref4 = jnp.einsum("bsd,vd->bsv", x4, w4, preferred_element_type=jnp.float32)

    out4 = jax.block_until_ready(unembed(x4, w4, out_dtype=jnp.float32))
    assert out4.shape == (b4, s4, v4)
    assert jnp.allclose(out4, ref4, atol=5e-2, rtol=5e-2)

    out5 = jax.block_until_ready(unembed(x4, w4))   # bf16 logits, scratch acc
    assert out5.dtype == jnp.bfloat16
    assert jnp.allclose(out5.astype(jnp.float32), ref4, atol=1e-1, rtol=1e-1)

    print("KERNEL_OK")
</pallas_src>

<mosaic_0001>
module attributes {stable_mosaic.version = 11 : i64} {
  func.func @_kernel_single_k(%arg0: i32, %arg1: i32, %arg2: i32, %arg3: memref<16x32xf32, #tpu.memory_space<vmem>>, %arg4: memref<128x32xf32, #tpu.memory_space<vmem>>, %arg5: memref<16x128xf32, #tpu.memory_space<vmem>>) attributes {dimension_semantics = [#tpu.dimension_semantics<parallel>, #tpu.dimension_semantics<parallel>, #tpu.dimension_semantics<arbitrary>], iteration_bounds = array<i64: 1, 1, 1>, scalar_prefetch = 0 : i64, scratch_operands = 0 : i64, tpu.core_type = #tpu.core_type<tc>, window_params = [{transform_indices = @transform_0, window_bounds = array<i64: 16, 32>}, {transform_indices = @transform_1, window_bounds = array<i64: 128, 32>}, {transform_indices = @transform_2, window_bounds = array<i64: 16, 128>}]} {
    %c0 = arith.constant 0 : index
    %c0_0 = arith.constant 0 : index
    %0 = vector.load %arg3[%c0, %c0_0] : memref<16x32xf32, #tpu.memory_space<vmem>>, vector<16x32xf32>
    %c0_1 = arith.constant 0 : index
    %c0_2 = arith.constant 0 : index
    %1 = vector.load %arg4[%c0_1, %c0_2] : memref<128x32xf32, #tpu.memory_space<vmem>>, vector<128x32xf32>
    %cst = arith.constant dense<0.000000e+00> : vector<16x128xf32>
    %2 = tpu.matmul %0, %1, %cst {dimension_numbers = #tpu.dot_dimension_numbers<[1], [1], [0], [0], [0, 0, 1, 0], [], []>} : vector<16x32xf32>, vector<128x32xf32>, vector<16x128xf32> -> vector<16x128xf32>
    %c0_3 = arith.constant 0 : index
    %c0_4 = arith.constant 0 : index
    %3 = vector.load %arg5[%c0_3, %c0_4] : memref<16x128xf32, #tpu.memory_space<vmem>>, vector<16x128xf32>
    tpu.vector_store %arg5[%c0_3, %c0_4], %2 {strides = array<i32>} : memref<16x128xf32, #tpu.memory_space<vmem>>, vector<16x128xf32>,
    return
  }
  func.func @transform_0(%arg0: i32, %arg1: i32, %arg2: i32) -> (i32, i32) {
    %c0_i32 = arith.constant 0 : i32
    return %arg0, %arg2 : i32, i32
  }
  func.func @transform_1(%arg0: i32, %arg1: i32, %arg2: i32) -> (i32, i32) {
    %c0_i32 = arith.constant 0 : i32
    return %arg1, %arg2 : i32, i32
  }
  func.func @transform_2(%arg0: i32, %arg1: i32, %arg2: i32) -> (i32, i32) {
    %c0_i32 = arith.constant 0 : i32
    return %arg0, %arg1 : i32, i32
  }
}

</mosaic_0001>

<llo_original>
// kernel: unembed.1
$region0: #{unembed.1}
  #allocation0 [shape = 'u32[]', space=smem, size = 0x4, offset = 0x4, fixed_abs, tag = 'smem constant byte address 0x4 - core index']
  #allocation1 [shape = 'u32[144,128]{1,0:T(1,128)}', space=vmem, size = 0x12000, scoped, tag = 'internal scratch']
  %s0 = inlined_call_operand.vmem [shape: f32[16,32], index: 0, kind: input, shape index: {}]
  %s1 = inlined_call_operand.vmem [shape: f32[128,32], index: 1, kind: input, shape index: {}]
  %s2 = inlined_call_operand.hbm [shape: f32[16,128], index: 2, kind: output, shape index: {}]
  %s3 = sld [smem:[#allocation0]]
  $region18: #{unembed.1} parent=0
    _
  %s5 = ssub.s32 1, %s3
  %s6 = scalar_select 0, %s5, %s3
  $region1: #{unembed.1} parent=0
    #allocation2 [shape = 'u8[8192]{0}', space=vmem, size = 0x2000, scoped, tag = 'output window, operand 0, single buffered']
    #allocation3 [shape = 's32[1]{0}', space=sflag, size = 0x4, scoped, tag = 'scoped memory for unembed.1']
    %7 = vsyncpa [#allocation3], 0
    // Predicated region
    $region2: #{unembed.1} parent=1 // pred_check
      _
    $region3: #{unembed.1} parent=1 // pred_check_branch
      %9 = sbr.rel (0) target = $region5
    $region4: #{unembed.1} parent=1 // pred_region
      _
    $region5: #{unembed.1} parent=1 // pred_fallthru
      _
    // Predicated region
    $region6: #{unembed.1} parent=1 // pred_check
      _
    $region7: #{unembed.1} parent=1 // pred_check_branch
      %11 = sbr.rel (0) target = $region9
    $region8: #{unembed.1} parent=1 // pred_region
      _
    $region9: #{unembed.1} parent=1 // pred_fallthru
      _
    %v12 = vld [vmem:[%s0] sm:$0xff]
    %v13 = vld [vmem:[%s0 + $0x8] sm:$0xff]
    %v14 = vld [vmem:[%s1] sm:$0xff]
    %v15 = vld [vmem:[%s1 + $0x8] sm:$0xff]
    %v16 = vld [vmem:[%s1 + $0x10] sm:$0xff]
    %v17 = vld [vmem:[%s1 + $0x18] sm:$0xff]
    %v18 = vld [vmem:[%s1 + $0x20] sm:$0xff]
    %v19 = vld [vmem:[%s1 + $0x28] sm:$0xff]
    %v20 = vld [vmem:[%s1 + $0x30] sm:$0xff]
    %v21 = vld [vmem:[%s1 + $0x38] sm:$0xff]
    %v22 = vld [vmem:[%s1 + $0x40] sm:$0xff]
    %v23 = vld [vmem:[%s1 + $0x48] sm:$0xff]
    %v24 = vld [vmem:[%s1 + $0x50] sm:$0xff]
    %v25 = vld [vmem:[%s1 + $0x58] sm:$0xff]
    %v26 = vld [vmem:[%s1 + $0x60] sm:$0xff]
    %v27 = vld [vmem:[%s1 + $0x68] sm:$0xff]
    %v28 = vld [vmem:[%s1 + $0x70] sm:$0xff]
    %v29 = vld [vmem:[%s1 + $0x78] sm:$0xff]
    %vm30 = vcmask 261120
    %v32 = vsel %vm30, %v12, 0
    %v35 = vsel %vm30, %v13, 0
    %v38 = vsel %vm30, %v14, 0
    %v41 = vsel %vm30, %v15, 0
    %v44 = vsel %vm30, %v16, 0
    %v47 = vsel %vm30, %v17, 0
    %v50 = vsel %vm30, %v18, 0
    %v53 = vsel %vm30, %v19, 0
    %v56 = vsel %vm30, %v20, 0
    %v59 = vsel %vm30, %v21, 0
    %v62 = vsel %vm30, %v22, 0
    %v65 = vsel %vm30, %v23, 0
    %v68 = vsel %vm30, %v24, 0
    %v71 = vsel %vm30, %v25, 0
    %v74 = vsel %vm30, %v26, 0
    %v77 = vsel %vm30, %v27, 0
    %v80 = vsel %vm30, %v28, 0
    %v83 = vsel %vm30, %v29, 0
    %85 = vmatprep.subr.mxu0 0.0
    %86 = vmatpush1.xpose.msra.mxu0 %v38
    %87 = vmatprep.subr.mxu0 0.0
    %88 = vmatpush1.xpose.msra.mxu0 %v41
    %89 = vmatprep.subr.mxu0 0.0
    %90 = vmatpush1.xpose.msra.mxu0 %v44
    %91 = vmatprep.subr.mxu0 0.0
    %92 = vmatpush1.xpose.msra.mxu0 %v47
    %93 = vmatprep.subr.mxu0 0.0
    %94 = vmatpush1.xpose.msra.mxu0 %v50
    %95 = vmatprep.subr.mxu0 0.0
    %96 = vmatpush1.xpose.msra.mxu0 %v53
    %97 = vmatprep.subr.mxu0 0.0
    %98 = vmatpush1.xpose.msra.mxu0 %v56
    %99 = vmatprep.subr.mxu0 0.0
    %100 = vmatpush1.xpose.msra.mxu0 %v59
    %101 = vmatprep.subr.mxu0 0.0
    %102 = vmatpush1.xpose.msra.mxu0 %v62
    %103 = vmatprep.subr.mxu0 0.0
    %104 = vmatpush1.xpose.msra.mxu0 %v65
    %105 = vmatprep.subr.mxu0 0.0
    %106 = vmatpush1.xpose.msra.mxu0 %v68
    %107 = vmatprep.subr.mxu0 0.0
    %108 = vmatpush1.xpose.msra.mxu0 %v71
    %109 = vmatprep.subr.mxu0 0.0
    %110 = vmatpush1.xpose.msra.mxu0 %v74
    %111 = vmatprep.subr.mxu0 0.0
    %112 = vmatpush1.xpose.msra.mxu0 %v77
    %113 = vmatprep.subr.mxu0 0.0
    %114 = vmatpush1.xpose.msra.mxu0 %v80
    %115 = vmatprep.subr.mxu0 0.0
    %116 = vmatpush1.xpose.msra.mxu0 %v83
    %117 = vmatprep.subr.mxu0 0.0
    %118 = vmatpush1.xpose.msra.mxu0 0.0
    %119 = vmatprep.subr.mxu0 0.0
    %120 = vmatpush1.xpose.msra.mxu0 0.0
    %121 = vmatprep.subr.mxu0 0.0
    %122 = vmatpush1.xpose.msra.mxu0 0.0
    %123 = vmatprep.subr.mxu0 0.0
    %124 = vmatpush1.xpose.msra.mxu0 0.0
    %125 = vmatprep.subr.mxu0 0.0
    %126 = vmatpush1.xpose.msra.mxu0 0.0
    %127 = vmatprep.subr.mxu0 0.0
    %128 = vmatpush1.xpose.msra.mxu0 0.0
    %129 = vmatprep.subr.mxu0 0.0
    %130 = vmatpush1.xpose.msra.mxu0 0.0
    %131 = vmatprep.subr.mxu0 0.0
    %132 = vmatpush1.xpose.msra.mxu0 0.0
    %133 = vmatprep.subr.mxu0 0.0
    %134 = vmatpush1.xpose.msra.mxu0 0.0
    %135 = vmatprep.subr.mxu0 0.0
    %136 = vmatpush1.xpose.msra.mxu0 0.0
    %137 = vmatprep.subr.mxu0 0.0
    %138 = vmatpush1.xpose.msra.mxu0 0.0
    %139 = vmatprep.subr.mxu0 0.0
    %140 = vmatpush1.xpose.msra.mxu0 0.0
    %141 = vmatprep.subr.mxu0 0.0
    %142 = vmatpush1.xpose.msra.mxu0 0.0
    %143 = vmatprep.subr.mxu0 0.0
    %144 = vmatpush1.xpose.msra.mxu0 0.0
    %145 = vmatprep.subr.mxu0 0.0
    %146 = vmatpush1.xpose.msra.mxu0 0.0
    %147 = vmatprep.subr.mxu0 0.0
    %148 = vmatpush1.xpose.msra.mxu0 0.0
    %149 = vmatprep.mubr.f32.mxu0 0.0
    %150 = vmatmul.mubr.f32.gmra.mrb[0].mxu0 %v32
    %v151 = vpop.f32.mrb[0].mxu0
    %v152 = vadd.f32 0.0, %v151
    %v153 = vpop.f32.mrb[0].mxu0
    %154 = vmatprep.mubr.f32.mxu0 0.0
    %155 = vmatmul.mubr.f32.gmra.mrb[0].mxu0 %v35
    %v156 = vpop.f32.mrb[0].mxu0
    %v157 = vadd.f32 0.0, %v156
    %v158 = vpop.f32.mrb[0].mxu0
    %159 = vdwg.mxu0
    %160 = vst [vmem:[#allocation2] sm:$0xff] %v152
    %161 = vst [vmem:[#allocation2 + $0x8] sm:$0xff] %v157
    // Predicated region
    $region10: #{unembed.1} parent=1 // pred_check
      _
    $region11: #{unembed.1} parent=1 // pred_check_branch
      %163 = sbr.rel (0) target = $region13
    $region12: #{unembed.1} parent=1 // pred_region
      %s165 = ssub.s32 256, 256
      %166 = vsyncadd [#allocation3], %s165
      %s167 = sshll.u32 [#allocation2], 4
      %s168 = int_to_ptr.vmem [resolvable:$true] %s167
      %173 = dma.vmem_to_hbm [thread:$0]  %s168, 256, %s2, [#allocation3], 128, 128, 8
    $region13: #{unembed.1} parent=1 // pred_fallthru
      _
    // Predicated region
    $region14: #{unembed.1} parent=1 // pred_check
      _
    $region15: #{unembed.1} parent=1 // pred_check_branch
      %175 = sbr.rel (0) target = $region17
    $region16: #{unembed.1} parent=1 // pred_region
      %176 = dma.done [#allocation3], 256
    $region17: #{unembed.1} parent=1 // pred_fallthru
      _
    %177 = vsyncpa [#allocation3], 1

</llo_original>
